<compile_context>
chip_gen: v7x
topology: tpu7x:2x2x1
jax: 0.10.0
libtpu: 0.0.40
codegen_flags: <defaults>
</compile_context>

<pallas_src>
import functools

import jax
import jax.numpy as jnp
from jax.experimental import pallas as pl
from jax.experimental.pallas import tpu as pltpu


def _round_up(n: int, m: int) -> int:
    return ((n + m - 1) // m) * m


def _pick_tile_b(B: int) -> int:
    """Batch tile: big (amortizes per-step overhead / fills the MXU pass), but keep
    >=2 grid tiles when the batch allows it so v7x's two TensorCores both work."""
    tile = min(512, _round_up(B, 8))
    if pl.cdiv(B, tile) < 2 and B > 8:
        tile = max(8, _round_up(pl.cdiv(B, 2), 8))
    return tile


def concept_model_kernel(x_ref, w1_ref, b1_ref, wt_ref, bt_ref,
                         c_ref, r_ref, t_ref, *, concept_pad):
    """One batch tile: fused (x@W1 + b1) -> sigmoid on concept slab -> (@Wt + bt).

    Lane layout of the packed first layer (all widths 128-multiples):
      hidden[:, :concept_pad]   = concept_logits | 0-pad
      hidden[:, concept_pad:]   = residual       | 0-pad
    """
    # First layer: ONE MXU matmul covering concept_network and residual_network.
    # x and weights already share the matmul dtype (packed host-side); f32 accumulate.
    hidden = (
        jnp.dot(x_ref[...], w1_ref[...], preferred_element_type=jnp.float32)
        + b1_ref[...]
    )  # (TILE_B, Cp + Rp) f32

    c_slab = hidden[:, :concept_pad]   # 128-aligned static slice (no relayout)
    r_slab = hidden[:, concept_pad:]

    # Lane-dense, unmasked stores of the raw logits / residual.
    c_ref[...] = c_slab.astype(c_ref.dtype)
    r_ref[...] = r_slab.astype(r_ref.dtype)

    # get_concept_predictions ('binary'): sigmoid ONLY on the concept slab.
    # Padded concept lanes become sigmoid(0)=0.5 but hit zero rows of Wt -> inert.
    bottleneck = jnp.concatenate([jax.nn.sigmoid(c_slab), r_slab], axis=-1)

    # target_network: Linear(C+R -> K) on cat([concept_preds, residual], -1).
    target = (
        jnp.dot(bottleneck.astype(wt_ref.dtype), wt_ref[...],
                preferred_element_type=jnp.float32)
        + bt_ref[...]
    )
    t_ref[...] = target.astype(t_ref.dtype)


def pack_params(params, matmul_dtype=jnp.float32):
    """One-time host-side packing/padding/casting of the six Linear params.

    Returns (packed, dims) with:
      W1 : (D, Cp+Rp)  = [Wc | 0 | Wr | 0]   (matmul_dtype)     b1 : (1, Cp+Rp) f32
      Wt : (Cp+Rp, Kp) = rows remapped to the padded lanes      bt : (1, Kp)    f32
      dims = (D, C, R, K) as plain Python ints (STATIC — keep out of jit pytrees).
    Padded W1 columns / Wt rows / biases are zero, so padded lanes are inert.
    Use matmul_dtype=jnp.bfloat16 for production shapes (f32 accumulation is kept
    via preferred_element_type in the kernel).
    """
    Wc, bc, Wr, br, Wt, bt = (params[k] for k in ("Wc", "bc", "Wr", "br", "Wt", "bt"))
    D, C = Wc.shape
    R = Wr.shape[1]
    K = Wt.shape[1]
    Cp, Rp, Kp = _round_up(C, 128), _round_up(R, 128), _round_up(K, 128)
    Hp = Cp + Rp

    W1 = (jnp.zeros((D, Hp), jnp.float32)
          .at[:, :C].set(Wc)
          .at[:, Cp:Cp + R].set(Wr))
    b1 = (jnp.zeros((1, Hp), jnp.float32)
          .at[:, :C].set(bc)
          .at[:, Cp:Cp + R].set(br))
    Wt_p = (jnp.zeros((Hp, Kp), jnp.float32)
            .at[:C, :K].set(Wt[:C])
            .at[Cp:Cp + R, :K].set(Wt[C:]))
    bt_p = jnp.zeros((1, Kp), jnp.float32).at[:, :K].set(bt)

    packed = {"W1": W1.astype(matmul_dtype), "b1": b1,
              "Wt": Wt_p.astype(matmul_dtype), "bt": bt_p}
    return packed, (D, C, R, K)


@functools.partial(jax.jit, static_argnames=("dims", "out_dtype"))
def concept_model_forward(x, W1, b1, Wt, bt, *, dims, out_dtype=jnp.float32):
    """x: (B, D). Returns (concept_logits, residual, target_logits).

    out_dtype=jnp.bfloat16 halves output writeback bytes if downstream tolerates it.
    """
    B, D = x.shape
    _, C, R, K = dims
    Cp, Rp, Kp = _round_up(C, 128), _round_up(R, 128), _round_up(K, 128)
    Hp = Cp + Rp
    assert W1.shape == (D, Hp) and Wt.shape == (Hp, Kp)

    # Single cheap cast of the activations to the (pre-cast) weight matmul dtype.
    if x.dtype != W1.dtype:
        x = x.astype(W1.dtype)

    TILE_B = _pick_tile_b(B)
    grid = (pl.cdiv(B, TILE_B),)   # partial last tile handled by masked writeback

    kernel = functools.partial(concept_model_kernel, concept_pad=Cp)

    def resident(shape):
        # Constant-index operands: single pipeline buffer (no pointless double-buffer).
        return pl.BlockSpec(shape, lambda i: (0, 0), pipeline_mode=pl.Buffered(1))

    c_out, r_out, t_out = pl.pallas_call(
        kernel,
        out_shape=(
            jax.ShapeDtypeStruct((B, Cp), out_dtype),
            jax.ShapeDtypeStruct((B, Rp), out_dtype),
            jax.ShapeDtypeStruct((B, Kp), out_dtype),
        ),
        grid=grid,
        in_specs=[
            pl.BlockSpec((TILE_B, D), lambda i: (i, 0)),  # x tile (double-buffered)
            resident((D, Hp)),                            # W1  (VMEM-resident)
            resident((1, Hp)),                            # b1
            resident((Hp, Kp)),                           # Wt
            resident((1, Kp)),                            # bt
        ],
        out_specs=(
            pl.BlockSpec((TILE_B, Cp), lambda i: (i, 0)),  # concept_logits slab
            pl.BlockSpec((TILE_B, Rp), lambda i: (i, 0)),  # residual slab
            pl.BlockSpec((TILE_B, Kp), lambda i: (i, 0)),  # target_logits slab
        ),
        compiler_params=pltpu.CompilerParams(
            dimension_semantics=("parallel",),       # 2-TC sharding on v7x
            vmem_limit_bytes=64 * 1024 * 1024,       # explicit; safe on v7x, raise on v5e/v6e
        ),
    )(x, W1, b1, Wt, bt)

    # No-ops whenever C / R / K are 128-multiples (production shapes).
    concept_logits = c_out if C == Cp else c_out[:, :C]
    residual = r_out if R == Rp else r_out[:, :R]
    target_logits = t_out if K == Kp else t_out[:, :K]
    return concept_logits, residual, target_logits


def init_params(key, D, C, R, K):
    ks = jax.random.split(key, 6)
    scale = 0.1
    return {
        "Wc": scale * jax.random.normal(ks[0], (D, C), jnp.float32),
        "bc": scale * jax.random.normal(ks[1], (1, C), jnp.float32),
        "Wr": scale * jax.random.normal(ks[2], (D, R), jnp.float32),
        "br": scale * jax.random.normal(ks[3], (1, R), jnp.float32),
        "Wt": scale * jax.random.normal(ks[4], (C + R, K), jnp.float32),
        "bt": scale * jax.random.normal(ks[5], (1, K), jnp.float32),
    }


def reference_forward(x, params):
    cl = x @ params["Wc"] + params["bc"]
    res = x @ params["Wr"] + params["br"]
    cp = jax.nn.sigmoid(cl)
    xb = jnp.concatenate([cp, res], axis=-1)
    tl = xb @ params["Wt"] + params["bt"]
    return cl, res, tl


if __name__ == "__main__":
    # Small shapes consistent with the module: batch=8, input_dim=32,
    # concept_dim=8, residual_dim=16, num_classes=4.
    B, D, C, R, K = 8, 32, 8, 16, 4
    key = jax.random.PRNGKey(0)
    kx, kp = jax.random.split(key)
    x = jax.random.normal(kx, (B, D), jnp.float32)
    params = init_params(kp, D, C, R, K)

    # One-time host-side packing. f32 matmul dtype here so the 1e-5 reference
    # check is meaningful; use matmul_dtype=jnp.bfloat16 for production shapes.
    packed, dims = pack_params(params, matmul_dtype=jnp.float32)

    concept_logits, residual, target_logits = jax.block_until_ready(
        concept_model_forward(x, **packed, dims=dims)
    )

    # Sanity check against plain-JAX reference.
    cl_ref, res_ref, tl_ref = reference_forward(x, params)
    assert concept_logits.shape == (B, C)
    assert residual.shape == (B, R)
    assert target_logits.shape == (B, K)
    assert jnp.allclose(concept_logits, cl_ref, atol=1e-5, rtol=1e-5)
    assert jnp.allclose(residual, res_ref, atol=1e-5, rtol=1e-5)
    assert jnp.allclose(target_logits, tl_ref, atol=1e-5, rtol=1e-5)

    print("KERNEL_OK")
</pallas_src>

<mosaic_0001>
module attributes {stable_mosaic.version = 11 : i64} {
  func.func @concept_model_kernel(%arg0: i32, %arg1: memref<8x32xf32, #tpu.memory_space<vmem>>, %arg2: memref<32x256xf32, #tpu.memory_space<vmem>>, %arg3: memref<1x256xf32, #tpu.memory_space<vmem>>, %arg4: memref<256x128xf32, #tpu.memory_space<vmem>>, %arg5: memref<1x128xf32, #tpu.memory_space<vmem>>, %arg6: memref<8x128xf32, #tpu.memory_space<vmem>>, %arg7: memref<8x128xf32, #tpu.memory_space<vmem>>, %arg8: memref<8x128xf32, #tpu.memory_space<vmem>>) attributes {dimension_semantics = [#tpu.dimension_semantics<parallel>], iteration_bounds = array<i64: 1>, scalar_prefetch = 0 : i64, scratch_operands = 0 : i64, tpu.core_type = #tpu.core_type<tc>, window_params = [{transform_indices = @transform_0, window_bounds = array<i64: 8, 32>}, {pipeline_mode = #tpu.pipeline_mode<synchronous>, transform_indices = @transform_1, window_bounds = array<i64: 32, 256>}, {pipeline_mode = #tpu.pipeline_mode<synchronous>, transform_indices = @transform_2, window_bounds = array<i64: 1, 256>}, {pipeline_mode = #tpu.pipeline_mode<synchronous>, transform_indices = @transform_3, window_bounds = array<i64: 256, 128>}, {pipeline_mode = #tpu.pipeline_mode<synchronous>, transform_indices = @transform_4, window_bounds = array<i64: 1, 128>}, {transform_indices = @transform_5, window_bounds = array<i64: 8, 128>}, {transform_indices = @transform_6, window_bounds = array<i64: 8, 128>}, {transform_indices = @transform_7, window_bounds = array<i64: 8, 128>}]} {
    %c0 = arith.constant 0 : index
    %c0_0 = arith.constant 0 : index
    %0 = vector.load %arg1[%c0, %c0_0] : memref<8x32xf32, #tpu.memory_space<vmem>>, vector<8x32xf32>
    %c0_1 = arith.constant 0 : index
    %c0_2 = arith.constant 0 : index
    %1 = vector.load %arg2[%c0_1, %c0_2] : memref<32x256xf32, #tpu.memory_space<vmem>>, vector<32x256xf32>
    %cst = arith.constant dense<0.000000e+00> : vector<8x256xf32>
    %2 = tpu.matmul %0, %1, %cst {dimension_numbers = #tpu.dot_dimension_numbers<[1], [0], [0], [1], [0, 0, 1, 1], [], []>} : vector<8x32xf32>, vector<32x256xf32>, vector<8x256xf32> -> vector<8x256xf32>
    %c0_3 = arith.constant 0 : index
    %c0_4 = arith.constant 0 : index
    %3 = vector.load %arg3[%c0_3, %c0_4] : memref<1x256xf32, #tpu.memory_space<vmem>>, vector<1x256xf32>
    %4 = vector.broadcast %3 : vector<1x256xf32> to vector<8x256xf32>
    %5 = arith.addf %2, %4 : vector<8x256xf32>
    %6 = vector.extract_strided_slice %5 {offsets = [0, 0], sizes = [8, 128], strides = [1, 1]} : vector<8x256xf32> to vector<8x128xf32>
    %7 = vector.extract_strided_slice %5 {offsets = [0, 128], sizes = [8, 128], strides = [1, 1]} : vector<8x256xf32> to vector<8x128xf32>
    %c0_5 = arith.constant 0 : index
    %c0_6 = arith.constant 0 : index
    %8 = vector.load %arg6[%c0_5, %c0_6] : memref<8x128xf32, #tpu.memory_space<vmem>>, vector<8x128xf32>
    tpu.vector_store %arg6[%c0_5, %c0_6], %6 {strides = array<i32>} : memref<8x128xf32, #tpu.memory_space<vmem>>, vector<8x128xf32>,
    %c0_7 = arith.constant 0 : index
    %c0_8 = arith.constant 0 : index
    %9 = vector.load %arg7[%c0_7, %c0_8] : memref<8x128xf32, #tpu.memory_space<vmem>>, vector<8x128xf32>
    tpu.vector_store %arg7[%c0_7, %c0_8], %7 {strides = array<i32>} : memref<8x128xf32, #tpu.memory_space<vmem>>, vector<8x128xf32>,
    %10 = arith.negf %6 : vector<8x128xf32>
    %11 = math.exp %10 : vector<8x128xf32>
    %cst_9 = arith.constant 1.000000e+00 : f32
    %12 = vector.broadcast %cst_9 : f32 to vector<8x128xf32>
    %13 = arith.addf %12, %11 : vector<8x128xf32>
    %14 = arith.divf %12, %13 : vector<8x128xf32>
    %15 = tpu.concatenate %14, %7 in 1 : vector<8x128xf32>, vector<8x128xf32> -> vector<8x256xf32>
    %c0_10 = arith.constant 0 : index
    %c0_11 = arith.constant 0 : index
    %16 = vector.load %arg4[%c0_10, %c0_11] : memref<256x128xf32, #tpu.memory_space<vmem>>, vector<256x128xf32>
    %cst_12 = arith.constant dense<0.000000e+00> : vector<8x128xf32>
    %17 = tpu.matmul %15, %16, %cst_12 {dimension_numbers = #tpu.dot_dimension_numbers<[1], [0], [0], [1], [0, 0, 1, 1], [], []>} : vector<8x256xf32>, vector<256x128xf32>, vector<8x128xf32> -> vector<8x128xf32>
    %c0_13 = arith.constant 0 : index
    %c0_14 = arith.constant 0 : index
    %18 = vector.load %arg5[%c0_13, %c0_14] : memref<1x128xf32, #tpu.memory_space<vmem>>, vector<1x128xf32>
    %19 = vector.broadcast %18 : vector<1x128xf32> to vector<8x128xf32>
    %20 = arith.addf %17, %19 : vector<8x128xf32>
    %c0_15 = arith.constant 0 : index
    %c0_16 = arith.constant 0 : index
    %21 = vector.load %arg8[%c0_15, %c0_16] : memref<8x128xf32, #tpu.memory_space<vmem>>, vector<8x128xf32>
    tpu.vector_store %arg8[%c0_15, %c0_16], %20 {strides = array<i32>} : memref<8x128xf32, #tpu.memory_space<vmem>>, vector<8x128xf32>,
    return
  }
  func.func @transform_0(%arg0: i32) -> (i32, i32) {
    %c0_i32 = arith.constant 0 : i32
    %c0_i32_0 = arith.constant 0 : i32
    return %arg0, %c0_i32 : i32, i32
  }
  func.func @transform_1(%arg0: i32) -> (i32, i32) {
    %c0_i32 = arith.constant 0 : i32
    %c0_i32_0 = arith.constant 0 : i32
    %c0_i32_1 = arith.constant 0 : i32
    return %c0_i32, %c0_i32_0 : i32, i32
  }
  func.func @transform_2(%arg0: i32) -> (i32, i32) {
    %c0_i32 = arith.constant 0 : i32
    %c0_i32_0 = arith.constant 0 : i32
    %c0_i32_1 = arith.constant 0 : i32
    return %c0_i32, %c0_i32_0 : i32, i32
  }
  func.func @transform_3(%arg0: i32) -> (i32, i32) {
    %c0_i32 = arith.constant 0 : i32
    %c0_i32_0 = arith.constant 0 : i32
    %c0_i32_1 = arith.constant 0 : i32
    return %c0_i32, %c0_i32_0 : i32, i32
  }
  func.func @transform_4(%arg0: i32) -> (i32, i32) {
    %c0_i32 = arith.constant 0 : i32
    %c0_i32_0 = arith.constant 0 : i32
    %c0_i32_1 = arith.constant 0 : i32
    return %c0_i32, %c0_i32_0 : i32, i32
  }
  func.func @transform_5(%arg0: i32) -> (i32, i32) {
    %c0_i32 = arith.constant 0 : i32
    %c0_i32_0 = arith.constant 0 : i32
    return %arg0, %c0_i32 : i32, i32
  }
  func.func @transform_6(%arg0: i32) -> (i32, i32) {
    %c0_i32 = arith.constant 0 : i32
    %c0_i32_0 = arith.constant 0 : i32
    return %arg0, %c0_i32 : i32, i32
  }
  func.func @transform_7(%arg0: i32) -> (i32, i32) {
    %c0_i32 = arith.constant 0 : i32
    %c0_i32_0 = arith.constant 0 : i32
    return %arg0, %c0_i32 : i32, i32
  }
}

</mosaic_0001>

<llo_original>
// kernel: concept_model_forward.1
$region0: #{concept_model_forward.1}
  #allocation0 [shape = 'u32[]', space=smem, size = 0x4, offset = 0x4, fixed_abs, tag = 'smem constant byte address 0x4 - core index']
  #allocation1 [shape = 'u32[144,128]{1,0:T(1,128)}', space=vmem, size = 0x12000, scoped, tag = 'internal scratch']
  %s0 = inlined_call_operand.hbm [shape: f32[8,32], index: 0, kind: input, shape index: {}]
  %s1 = inlined_call_operand.hbm [shape: f32[32,256], index: 1, kind: input, shape index: {}]
  %s2 = inlined_call_operand.hbm [shape: f32[1,256], index: 2, kind: input, shape index: {}]
  %s3 = inlined_call_operand.hbm [shape: f32[256,128], index: 3, kind: input, shape index: {}]
  %s4 = inlined_call_operand.hbm [shape: f32[1,128], index: 4, kind: input, shape index: {}]
  %s5 = inlined_call_operand.hbm [shape: f32[8,128], index: 5, kind: output, shape index: {0}]
  %s6 = inlined_call_operand.hbm [shape: f32[8,128], index: 6, kind: output, shape index: {1}]
  %s7 = inlined_call_operand.hbm [shape: f32[8,128], index: 7, kind: output, shape index: {2}]
  %8 = xla_tuple %s5, %s6, %s7
  %s9 = sld [smem:[#allocation0]]
  $region66: #{concept_model_forward.1} parent=0
    _
  %s11 = ssub.s32 1, %s9
  %s12 = scalar_select 0, %s11, %s9
  $region1: #{concept_model_forward.1} parent=0
    #allocation2 [shape = 'u8[4096]{0}', space=vmem, size = 0x1000, scoped, tag = 'input window, operand 0, single buffered']
    #allocation3 [shape = 's32[1]{0}', space=sflag, size = 0x4, scoped, tag = 'scoped memory for concept_model_forward.1']
    #allocation4 [shape = 's32[1]{0}', space=sflag, size = 0x4, scoped, tag = 'scoped memory for concept_model_forward.1']
    #allocation5 [shape = 'u8[32768]{0}', space=vmem, size = 0x8000, scoped, tag = 'input window, operand 1, single buffered']
    #allocation6 [shape = 's32[1]{0}', space=sflag, size = 0x4, scoped, tag = 'scoped memory for concept_model_forward.1']
    #allocation7 [shape = 'u8[1024]{0}', space=vmem, size = 0x400, scoped, tag = 'input window, operand 2, single buffered']
    #allocation8 [shape = 'u8[131072]{0}', space=vmem, size = 0x20000, scoped, tag = 'input window, operand 3, single buffered']
    #allocation9 [shape = 's32[1]{0}', space=sflag, size = 0x4, scoped, tag = 'scoped memory for concept_model_forward.1']
    #allocation10 [shape = 'u8[512]{0}', space=vmem, size = 0x400, scoped, tag = 'input window, operand 4, single buffered']
    #allocation11 [shape = 'u8[4096]{0}', space=vmem, size = 0x1000, scoped, tag = 'output window, operand 0, single buffered']
    #allocation12 [shape = 'u8[4096]{0}', space=vmem, size = 0x1000, scoped, tag = 'output window, operand 1, single buffered']
    #allocation13 [shape = 's32[1]{0}', space=sflag, size = 0x4, scoped, tag = 'scoped memory for concept_model_forward.1']
    #allocation14 [shape = 'u8[4096]{0}', space=vmem, size = 0x1000, scoped, tag = 'output window, operand 2, single buffered']
    %13 = vsyncpa [#allocation3], 0
    %14 = vsyncpa [#allocation6], 0
    %15 = vsyncpa [#allocation9], 0
    %16 = vsyncpa [#allocation4], 0
    %17 = vsyncpa [#allocation13], 0
    // Predicated region
    $region2: #{concept_model_forward.1} parent=1 // pred_check
      _
    $region3: #{concept_model_forward.1} parent=1 // pred_check_branch
      %19 = sbr.rel (0) target = $region5
    $region4: #{concept_model_forward.1} parent=1 // pred_region
      %s21 = ssub.s32 128, 128
      %22 = vsyncadd [#allocation3], %s21
      %s24 = sshll.u32 [#allocation2], 4
      %s25 = int_to_ptr.vmem [resolvable:$true] %s24
      %27 = dma.hbm_to_vmem [thread:$0]  %s0, 128, %s25, [#allocation3]
    $region5: #{concept_model_forward.1} parent=1 // pred_fallthru
      _
    // Predicated region
    $region6: #{concept_model_forward.1} parent=1 // pred_check
      _
    $region7: #{concept_model_forward.1} parent=1 // pred_check_branch
      %29 = sbr.rel (0) target = $region9
    $region8: #{concept_model_forward.1} parent=1 // pred_region
      %s31 = ssub.s32 1024, 1024
      %32 = vsyncadd [#allocation6], %s31
      %s33 = sshll.u32 [#allocation5], 4
      %s34 = int_to_ptr.vmem [resolvable:$true] %s33
      %39 = dma.hbm_to_vmem [thread:$0]  %s1, 1024, %s34, [#allocation6], 256, 256, 16
    $region9: #{concept_model_forward.1} parent=1 // pred_fallthru
      _
    // Predicated region
    $region10: #{concept_model_forward.1} parent=1 // pred_check
      _
    $region11: #{concept_model_forward.1} parent=1 // pred_check_branch
      %41 = sbr.rel (0) target = $region13
    $region12: #{concept_model_forward.1} parent=1 // pred_region
      %s43 = ssub.s32 32, 32
      %44 = vsyncadd [#allocation6], %s43
      %s46 = sshll.u32 [#allocation7], 4
      %s47 = int_to_ptr.vmem [resolvable:$true] %s46
      %49 = dma.hbm_to_vmem [thread:$0]  %s2, 32, %s47, [#allocation6]
    $region13: #{concept_model_forward.1} parent=1 // pred_fallthru
      _
    // Predicated region
    $region14: #{concept_model_forward.1} parent=1 // pred_check
      _
    $region15: #{concept_model_forward.1} parent=1 // pred_check_branch
      %51 = sbr.rel (0) target = $region17
    $region16: #{concept_model_forward.1} parent=1 // pred_region
      %s53 = ssub.s32 4096, 4096
      %54 = vsyncadd [#allocation9], %s53
      %s55 = sshll.u32 [#allocation8], 4
      %s56 = int_to_ptr.vmem [resolvable:$true] %s55
      %61 = dma.hbm_to_vmem [thread:$0]  %s3, 4096, %s56, [#allocation9], 128, 128, 8
    $region17: #{concept_model_forward.1} parent=1 // pred_fallthru
      _
    // Predicated region
    $region18: #{concept_model_forward.1} parent=1 // pred_check
      _
    $region19: #{concept_model_forward.1} parent=1 // pred_check_branch
      %63 = sbr.rel (0) target = $region21
    $region20: #{concept_model_forward.1} parent=1 // pred_region
      %s65 = ssub.s32 16, 16
      %66 = vsyncadd [#allocation9], %s65
      %s68 = sshll.u32 [#allocation10], 4
      %s69 = int_to_ptr.vmem [resolvable:$true] %s68
      %71 = dma.hbm_to_vmem [thread:$0]  %s4, 16, %s69, [#allocation9]
    $region21: #{concept_model_forward.1} parent=1 // pred_fallthru
      _
    // Predicated region
    $region22: #{concept_model_forward.1} parent=1 // pred_check
      _
    $region23: #{concept_model_forward.1} parent=1 // pred_check_branch
      %73 = sbr.rel (0) target = $region25
    $region24: #{concept_model_forward.1} parent=1 // pred_region
      %74 = dma.done [#allocation3], 128
    $region25: #{concept_model_forward.1} parent=1 // pred_fallthru
      _
    // Predicated region
    $region26: #{concept_model_forward.1} parent=1 // pred_check
      _
    $region27: #{concept_model_forward.1} parent=1 // pred_check_branch
      %76 = sbr.rel (0) target = $region29
    $region28: #{concept_model_forward.1} parent=1 // pred_region
      %77 = dma.done [#allocation6], 1024
    $region29: #{concept_model_forward.1} parent=1 // pred_fallthru
      _
    // Predicated region
    $region30: #{concept_model_forward.1} parent=1 // pred_check
      _
    $region31: #{concept_model_forward.1} parent=1 // pred_check_branch
      %79 = sbr.rel (0) target = $region33
    $region32: #{concept_model_forward.1} parent=1 // pred_region
      %80 = dma.done [#allocation6], 32
    $region33: #{concept_model_forward.1} parent=1 // pred_fallthru
      _
    // Predicated region
    $region34: #{concept_model_forward.1} parent=1 // pred_check
      _
    $region35: #{concept_model_forward.1} parent=1 // pred_check_branch
      %82 = sbr.rel (0) target = $region37
    $region36: #{concept_model_forward.1} parent=1 // pred_region
      %83 = dma.done [#allocation9], 4096
    $region37: #{concept_model_forward.1} parent=1 // pred_fallthru
      _
    // Predicated region
    $region38: #{concept_model_forward.1} parent=1 // pred_check
      _
    $region39: #{concept_model_forward.1} parent=1 // pred_check_branch
      %85 = sbr.rel (0) target = $region41
    $region40: #{concept_model_forward.1} parent=1 // pred_region
      %86 = dma.done [#allocation9], 16
    $region41: #{concept_model_forward.1} parent=1 // pred_fallthru
      _
    %v87 = vld [vmem:[#allocation2] sm:$0xff]
    %v88 = vld [vmem:[#allocation5] sm:$0xff]
    %v89 = vld [vmem:[#allocation5 + $0x8] sm:$0xff]
    %v90 = vld [vmem:[#allocation5 + $0x10] sm:$0xff]
    %v91 = vld [vmem:[#allocation5 + $0x18] sm:$0xff]
    %v92 = vld [vmem:[#allocation5 + $0x20] sm:$0xff]
    %v93 = vld [vmem:[#allocation5 + $0x28] sm:$0xff]
    %v94 = vld [vmem:[#allocation5 + $0x30] sm:$0xff]
    %v95 = vld [vmem:[#allocation5 + $0x38] sm:$0xff]
    %v96 = vld [vmem:[#allocation7] sm:$0x3]
    %v98 = vlaneseq
    %v99 = vshrl.u32 %v98, 7
    %v100 = vsub.s32 0, %v99
    %v101 = vrot.slane %v96, %v100
    %v102 = vlaneseq
    %v103 = vshrl.u32 %v102, 7
    %v104 = vsub.s32 1, %v103
    %v105 = vrot.slane %v96, %v104
    %vm108 = vcmask 261120
    %v110 = vsel %vm108, %v87, 0
    %112 = vmatprep.subr.mxu0 %v89
    %113 = vmatpush1.msra.mxu0 %v88
    %114 = vmatprep.subr.mxu0 %v91
    %115 = vmatpush1.msra.mxu0 %v90
    %116 = vmatprep.subr.mxu0 %v93
    %117 = vmatpush1.msra.mxu0 %v92
    %118 = vmatprep.subr.mxu0 %v95
    %119 = vmatpush1.msra.mxu0 %v94
    %120 = vmatprep.subr.mxu0 0.0
    %121 = vmatpush1.msra.mxu0 0.0
    %122 = vmatprep.subr.mxu0 0.0
    %123 = vmatpush1.msra.mxu0 0.0
    %124 = vmatprep.subr.mxu0 0.0
    %125 = vmatpush1.msra.mxu0 0.0
    %126 = vmatprep.subr.mxu0 0.0
    %127 = vmatpush1.msra.mxu0 0.0
    %128 = vmatprep.subr.mxu0 0.0
    %129 = vmatpush1.msra.mxu0 0.0
    %130 = vmatprep.subr.mxu0 0.0
    %131 = vmatpush1.msra.mxu0 0.0
    %132 = vmatprep.subr.mxu0 0.0
    %133 = vmatpush1.msra.mxu0 0.0
    %134 = vmatprep.subr.mxu0 0.0
    %135 = vmatpush1.msra.mxu0 0.0
    %136 = vmatprep.subr.mxu0 0.0
    %137 = vmatpush1.msra.mxu0 0.0
    %138 = vmatprep.subr.mxu0 0.0
    %139 = vmatpush1.msra.mxu0 0.0
    %140 = vmatprep.subr.mxu0 0.0
    %141 = vmatpush1.msra.mxu0 0.0
    %142 = vmatprep.subr.mxu0 0.0
    %143 = vmatpush1.msra.mxu0 0.0
    %144 = vmatprep.subr.mxu0 0.0
    %145 = vmatpush1.msra.mxu0 0.0
    %146 = vmatprep.subr.mxu0 0.0
    %147 = vmatpush1.msra.mxu0 0.0
    %148 = vmatprep.subr.mxu0 0.0
    %149 = vmatpush1.msra.mxu0 0.0
    %150 = vmatprep.subr.mxu0 0.0
    %151 = vmatpush1.msra.mxu0 0.0
    %152 = vmatprep.subr.mxu0 0.0
    %153 = vmatpush1.msra.mxu0 0.0
    %154 = vmatprep.subr.mxu0 0.0
    %155 = vmatpush1.msra.mxu0 0.0
    %156 = vmatprep.subr.mxu0 0.0
    %157 = vmatpush1.msra.mxu0 0.0
    %158 = vmatprep.subr.mxu0 0.0
    %159 = vmatpush1.msra.mxu0 0.0
    %160 = vmatprep.subr.mxu0 0.0
    %161 = vmatpush1.msra.mxu0 0.0
    %162 = vmatprep.subr.mxu0 0.0
    %163 = vmatpush1.msra.mxu0 0.0
    %164 = vmatprep.subr.mxu0 0.0
    %165 = vmatpush1.msra.mxu0 0.0
    %166 = vmatprep.subr.mxu0 0.0
    %167 = vmatpush1.msra.mxu0 0.0
    %168 = vmatprep.subr.mxu0 0.0
    %169 = vmatpush1.msra.mxu0 0.0
    %170 = vmatprep.subr.mxu0 0.0
    %171 = vmatpush1.msra.mxu0 0.0
    %172 = vmatprep.subr.mxu0 0.0
    %173 = vmatpush1.msra.mxu0 0.0
    %174 = vmatprep.subr.mxu0 0.0
    %175 = vmatpush1.msra.mxu0 0.0
    %176 = vmatprep.mubr.f32.mxu0 0.0
    %177 = vmatmul.mubr.f32.gmra.mrb[0].mxu0 %v110
    %v178 = vpop.f32.mrb[0].mxu0
    %v179 = vadd.f32 %v101, %v178
    %v180 = vpop.f32.mrb[0].mxu0
    %v181 = vadd.f32 %v105, %v180
    %182 = vdwg.mxu0
    %183 = vst [vmem:[#allocation11] sm:$0xff] %v179
    %184 = vst [vmem:[#allocation12] sm:$0xff] %v181
    %v185 = vxor.u32 %v179, 2147483648
    %v186 = vmul.f32 %v185, 1.442695
    %v187 = vpow.pop %v186
    %v188 = vadd.f32 %v187, 1.0
    %v189 = vrcp.pop %v188
    %v190 = vmul.f32 1.0, %v189
    %v191 = vld [vmem:[#allocation8] sm:$0xff]
    %v192 = vld [vmem:[#allocation8 + $0x8] sm:$0xff]
    %v193 = vld [vmem:[#allocation8 + $0x10] sm:$0xff]
    %v194 = vld [vmem:[#allocation8 + $0x18] sm:$0xff]
    %v195 = vld [vmem:[#allocation8 + $0x20] sm:$0xff]
    %v196 = vld [vmem:[#allocation8 + $0x28] sm:$0xff]
    %v197 = vld [vmem:[#allocation8 + $0x30] sm:$0xff]
    %v198 = vld [vmem:[#allocation8 + $0x38] sm:$0xff]
    %v199 = vld [vmem:[#allocation8 + $0x40] sm:$0xff]
    %v200 = vld [vmem:[#allocation8 + $0x48] sm:$0xff]
    %v201 = vld [vmem:[#allocation8 + $0x50] sm:$0xff]
    %v202 = vld [vmem:[#allocation8 + $0x58] sm:$0xff]
    %v203 = vld [vmem:[#allocation8 + $0x60] sm:$0xff]
    %v204 = vld [vmem:[#allocation8 + $0x68] sm:$0xff]
    %v205 = vld [vmem:[#allocation8 + $0x70] sm:$0xff]
    %v206 = vld [vmem:[#allocation8 + $0x78] sm:$0xff]
    %v207 = vld [vmem:[#allocation8 + $0x80] sm:$0xff]
    %v208 = vld [vmem:[#allocation8 + $0x88] sm:$0xff]
    %v209 = vld [vmem:[#allocation8 + $0x90] sm:$0xff]
    %v210 = vld [vmem:[#allocation8 + $0x98] sm:$0xff]
    %v211 = vld [vmem:[#allocation8 + $0xa0] sm:$0xff]
    %v212 = vld [vmem:[#allocation8 + $0xa8] sm:$0xff]
    %v213 = vld [vmem:[#allocation8 + $0xb0] sm:$0xff]
    %v214 = vld [vmem:[#allocation8 + $0xb8] sm:$0xff]
    %v215 = vld [vmem:[#allocation8 + $0xc0] sm:$0xff]
    %v216 = vld [vmem:[#allocation8 + $0xc8] sm:$0xff]
    %v217 = vld [vmem:[#allocation8 + $0xd0] sm:$0xff]
    %v218 = vld [vmem:[#allocation8 + $0xd8] sm:$0xff]
    %v219 = vld [vmem:[#allocation8 + $0xe0] sm:$0xff]
    %v220 = vld [vmem:[#allocation8 + $0xe8] sm:$0xff]
    %v221 = vld [vmem:[#allocation8 + $0xf0] sm:$0xff]
    %v222 = vld [vmem:[#allocation8 + $0xf8] sm:$0xff]
    %v223 = vld [vmem:[#allocation10] sm:$0x1]
    %v225 = vlaneseq
    %v226 = vshrl.u32 %v225, 7
    %v227 = vsub.s32 0, %v226
    %v228 = vrot.slane %v223, %v227
    %230 = vmatprep.subr.mxu0 0.0
    %231 = vmatpush1.msra.mxu0 %v191
    %232 = vmatprep.subr.mxu0 0.0
    %233 = vmatpush1.msra.mxu0 %v192
    %234 = vmatprep.subr.mxu0 0.0
    %235 = vmatpush1.msra.mxu0 %v193
    %236 = vmatprep.subr.mxu0 0.0
    %237 = vmatpush1.msra.mxu0 %v194
    %238 = vmatprep.subr.mxu0 0.0
    %239 = vmatpush1.msra.mxu0 %v195
    %240 = vmatprep.subr.mxu0 0.0
    %241 = vmatpush1.msra.mxu0 %v196
    %242 = vmatprep.subr.mxu0 0.0
    %243 = vmatpush1.msra.mxu0 %v197
    %244 = vmatprep.subr.mxu0 0.0
    %245 = vmatpush1.msra.mxu0 %v198
    %246 = vmatprep.subr.mxu0 0.0
    %247 = vmatpush1.msra.mxu0 %v199
    %248 = vmatprep.subr.mxu0 0.0
    %249 = vmatpush1.msra.mxu0 %v200
    %250 = vmatprep.subr.mxu0 0.0
    %251 = vmatpush1.msra.mxu0 %v201
    %252 = vmatprep.subr.mxu0 0.0
    %253 = vmatpush1.msra.mxu0 %v202
    %254 = vmatprep.subr.mxu0 0.0
    %255 = vmatpush1.msra.mxu0 %v203
    %256 = vmatprep.subr.mxu0 0.0
    %257 = vmatpush1.msra.mxu0 %v204
    %258 = vmatprep.subr.mxu0 0.0
    %259 = vmatpush1.msra.mxu0 %v205
    %260 = vmatprep.subr.mxu0 0.0
    %261 = vmatpush1.msra.mxu0 %v206
    %262 = vmatprep.subr.mxu0 0.0
    %263 = vmatpush1.msra.mxu0 %v207
    %264 = vmatprep.subr.mxu0 0.0
    %265 = vmatpush1.msra.mxu0 %v208
    %266 = vmatprep.subr.mxu0 0.0
    %267 = vmatpush1.msra.mxu0 %v209
    %268 = vmatprep.subr.mxu0 0.0
    %269 = vmatpush1.msra.mxu0 %v210
    %270 = vmatprep.subr.mxu0 0.0
    %271 = vmatpush1.msra.mxu0 %v211
    %272 = vmatprep.subr.mxu0 0.0
    %273 = vmatpush1.msra.mxu0 %v212
    %274 = vmatprep.subr.mxu0 0.0
    %275 = vmatpush1.msra.mxu0 %v213
    %276 = vmatprep.subr.mxu0 0.0
    %277 = vmatpush1.msra.mxu0 %v214
    %278 = vmatprep.subr.mxu0 0.0
    %279 = vmatpush1.msra.mxu0 %v215
    %280 = vmatprep.subr.mxu0 0.0
    %281 = vmatpush1.msra.mxu0 %v216
    %282 = vmatprep.subr.mxu0 0.0
    %283 = vmatpush1.msra.mxu0 %v217
    %284 = vmatprep.subr.mxu0 0.0
    %285 = vmatpush1.msra.mxu0 %v218
    %286 = vmatprep.subr.mxu0 0.0
    %287 = vmatpush1.msra.mxu0 %v219
    %288 = vmatprep.subr.mxu0 0.0
    %289 = vmatpush1.msra.mxu0 %v220
    %290 = vmatprep.subr.mxu0 0.0
    %291 = vmatpush1.msra.mxu0 %v221
    %292 = vmatprep.subr.mxu0 0.0
    %293 = vmatpush1.msra.mxu0 %v222
    %294 = vmatprep.mubr.f32.mxu0 %v181
    %295 = vmatmul.mubr.f32.gmra.mrb[0].mxu0 %v190
    %v296 = vpop.f32.mrb[0].mxu0
    %v297 = vadd.f32 %v228, %v296
    %v298 = vpop.f32.mrb[0].mxu0
    %299 = vdwg.mxu0
    %300 = vst [vmem:[#allocation14] sm:$0xff] %v297
    // Predicated region
    $region42: #{concept_model_forward.1} parent=1 // pred_check
      _
    $region43: #{concept_model_forward.1} parent=1 // pred_check_branch
      %302 = sbr.rel (0) target = $region45
    $region44: #{concept_model_forward.1} parent=1 // pred_region
      %s304 = ssub.s32 128, 128
      %305 = vsyncadd [#allocation4], %s304
      %s307 = sshll.u32 [#allocation11], 4
      %s308 = int_to_ptr.vmem [resolvable:$true] %s307
      %310 = dma.vmem_to_hbm [thread:$0]  %s308, 128, %s5, [#allocation4]
    $region45: #{concept_model_forward.1} parent=1 // pred_fallthru
      _
    // Predicated region
    $region46: #{concept_model_forward.1} parent=1 // pred_check
      _
    $region47: #{concept_model_forward.1} parent=1 // pred_check_branch
      %312 = sbr.rel (0) target = $region49
    $region48: #{concept_model_forward.1} parent=1 // pred_region
      %s314 = ssub.s32 128, 128
      %315 = vsyncadd [#allocation13], %s314
      %s317 = sshll.u32 [#allocation12], 4
      %s318 = int_to_ptr.vmem [resolvable:$true] %s317
      %320 = dma.vmem_to_hbm [thread:$0]  %s318, 128, %s6, [#allocation13]
    $region49: #{concept_model_forward.1} parent=1 // pred_fallthru
      _
    // Predicated region
    $region50: #{concept_model_forward.1} parent=1 // pred_check
      _
    $region51: #{concept_model_forward.1} parent=1 // pred_check_branch
      %322 = sbr.rel (0) target = $region53
    $region52: #{concept_model_forward.1} parent=1 // pred_region
      %s324 = ssub.s32 128, 128
      %325 = vsyncadd [#allocation13], %s324
      %s327 = sshll.u32 [#allocation14], 4
      %s328 = int_to_ptr.vmem [resolvable:$true] %s327
      %330 = dma.vmem_to_hbm [thread:$0]  %s328, 128, %s7, [#allocation13]
    $region53: #{concept_model_forward.1} parent=1 // pred_fallthru
      _
    // Predicated region
    $region54: #{concept_model_forward.1} parent=1 // pred_check
      _
    $region55: #{concept_model_forward.1} parent=1 // pred_check_branch
      %332 = sbr.rel (0) target = $region57
    $region56: #{concept_model_forward.1} parent=1 // pred_region
      %333 = dma.done [#allocation4], 128
    $region57: #{concept_model_forward.1} parent=1 // pred_fallthru
      _
    // Predicated region
    $region58: #{concept_model_forward.1} parent=1 // pred_check
      _
    $region59: #{concept_model_forward.1} parent=1 // pred_check_branch
      %335 = sbr.rel (0) target = $region61
    $region60: #{concept_model_forward.1} parent=1 // pred_region
      %336 = dma.done [#allocation13], 128
    $region61: #{concept_model_forward.1} parent=1 // pred_fallthru
      _
    // Predicated region
    $region62: #{concept_model_forward.1} parent=1 // pred_check
      _
    $region63: #{concept_model_forward.1} parent=1 // pred_check_branch
      %338 = sbr.rel (0) target = $region65
    $region64: #{concept_model_forward.1} parent=1 // pred_region
      %339 = dma.done [#allocation13], 128
    $region65: #{concept_model_forward.1} parent=1 // pred_fallthru
      _
    %340 = vsyncpa [#allocation3], 1
    %341 = vsyncpa [#allocation6], 1
    %342 = vsyncpa [#allocation9], 1
    %343 = vsyncpa [#allocation4], 1
    %344 = vsyncpa [#allocation13], 1

</llo_original>
